<compile_context>
chip_gen: v6e
topology: v6e:2x2x1
jax: 0.10.0
libtpu: 0.0.40
codegen_flags: <defaults>
</compile_context>

<pallas_src>
import jax
import jax.numpy as jnp
from jax import lax
from jax.experimental import pallas as pl
from jax.experimental.pallas import tpu as pltpu

LANES = 128
SUBLANES = 8
SUB_ROWS = 256          # inner sub-chunk: 256 rows * 128 lanes * 4 B = 128 KiB / operand


def _chip_config():
    """(ncores, row_tile) per TPU generation.

    row_tile: rows per grid step per input. 8192 rows = 4 MiB f32 per input
    block -> 16 MiB double-buffered for two inputs. v5e gets 4096 (8 MiB).
    ncores: leading parallel grid axis; only v7x has 2 TensorCores per chip.
    """
    try:
        kind = jax.devices()[0].device_kind.lower()
    except Exception:
        kind = ""
    if "v7" in kind:
        return 2, 8192
    if "v6" in kind:
        return 1, 8192
    # v5e / unknown: conservative tile.
    return 1, 4096


def _flatten_2d(x):
    """Flatten to (R, 128) with R a multiple of 8.

    Zero-copy reshape when numel % 1024 == 0 (typical NCHW with power-of-two
    spatial dims); otherwise a small zero-pad is materialized (padded zeros
    contribute nothing to the squared-error sum).
    """
    flat = x.reshape(-1)
    n = flat.shape[0]
    tile = SUBLANES * LANES
    padded = ((n + tile - 1) // tile) * tile
    if padded != n:
        # TODO(synk): ragged numel falls back to a padded copy; avoiding it
        # would need a manual-DMA tail gather, not worth it for this module.
        flat = jnp.pad(flat, (0, padded - n))
    return flat.reshape(padded // LANES, LANES)


def l2_loss(output, target, *, _row_tile=None):
    """Equivalent of torch: sum((target - output) ** 2) / batch / 64 / 64."""
    assert output.shape == target.shape
    batch = output.shape[0]
    inv_scale = 1.0 / (batch * 64.0 * 64.0)

    max_cores, default_row_tile = _chip_config()
    pred2d = _flatten_2d(output)
    tgt2d = _flatten_2d(target)
    rows = pred2d.shape[0]                       # static, multiple of 8

    row_tile = min(_row_tile or default_row_tile, rows)
    assert row_tile % SUBLANES == 0
    num_blocks = pl.cdiv(rows, row_tile)
    ncores = max_cores if num_blocks >= max_cores else 1
    chunks = pl.cdiv(num_blocks, ncores)
    has_tail = num_blocks * row_tile != rows     # last real block is partial
    has_dup = ncores * chunks != num_blocks      # clamped duplicate blocks exist

    n_full = row_tile // SUB_ROWS                # full inner sub-chunks per block
    rem = row_tile - n_full * SUB_ROWS           # static tail sub-chunk (multiple of 8)

    def sse_kernel(pred_ref, tgt_ref, acc_ref):
        c = pl.program_id(0)
        i = pl.program_id(1)
        blk = c * chunks + i                     # unclamped logical block id

        @pl.when(i == 0)
        def _():
            acc_ref[...] = jnp.zeros_like(acc_ref)

        def accum_sub(r0, size, masked):
            d = (tgt_ref[pl.ds(r0, size), :].astype(jnp.float32)
                 - pred_ref[pl.ds(r0, size), :].astype(jnp.float32))
            if masked:
                row_ids = (blk * row_tile + r0
                           + lax.broadcasted_iota(jnp.int32, (size, LANES), 0))
                # Mask per-element values before any reduction (undefined rows
                # of a partial tail block must never reach the sum).
                d = jnp.where(row_ids < rows, d, 0.0)
            # Vreg-shaped accumulation: per-vreg VPU adds, no cross-lane reduce.
            acc_ref[...] += jnp.sum(
                (d * d).reshape(size // SUBLANES, SUBLANES, LANES), axis=0)

        def accum_block(masked):
            if n_full > 0:
                def body(s, carry):
                    accum_sub(pl.multiple_of(s * SUB_ROWS, SUB_ROWS),
                              SUB_ROWS, masked)
                    return carry
                lax.fori_loop(0, n_full, body, 0)
            if rem > 0:
                accum_sub(n_full * SUB_ROWS, rem, masked)

        if not has_tail and not has_dup:
            accum_block(masked=False)
        else:
            unmasked_limit = num_blocks - 1 if has_tail else num_blocks

            @pl.when(blk < unmasked_limit)
            def _():
                accum_block(masked=False)

            if has_tail:
                @pl.when(blk == num_blocks - 1)
                def _():
                    accum_block(masked=True)
            # blk >= num_blocks (clamped duplicate DMA): skip compute entirely.

        @pl.when(i == chunks - 1)
        def _():
            acc_ref[...] = acc_ref[...] * inv_scale

    def in_index_map(c, i):
        # Clamp so the DMA never targets a fully out-of-bounds block; in-kernel
        # gating/masking discards duplicated or overhanging rows.
        return (jnp.minimum(c * chunks + i, num_blocks - 1), 0)

    numel = int(pred2d.size)
    in_bytes = 2 * numel * pred2d.dtype.itemsize

    # TODO(synk): on v7x, verify via xprof that the leading size-2 axis really
    # shards across both TensorCores; switch to pltpu.CORE_PARALLEL if not.
    partials = pl.pallas_call(
        sse_kernel,
        out_shape=jax.ShapeDtypeStruct((ncores * SUBLANES, LANES), jnp.float32),
        grid_spec=pltpu.PrefetchScalarGridSpec(
            num_scalar_prefetch=0,
            grid=(ncores, chunks),
            in_specs=[
                pl.BlockSpec((row_tile, LANES), in_index_map),
                pl.BlockSpec((row_tile, LANES), in_index_map),
            ],
            out_specs=pl.BlockSpec((SUBLANES, LANES), lambda c, i: (c, 0)),
        ),
        compiler_params=pltpu.CompilerParams(
            dimension_semantics=("parallel", "arbitrary"),
            vmem_limit_bytes=32 << 20,
        ),
        cost_estimate=pl.CostEstimate(
            flops=3 * numel,
            transcendentals=0,
            bytes_accessed=in_bytes + ncores * SUBLANES * LANES * 4,
        ),
    )(pred2d, tgt2d)

    # Single tiny cross-partial reduce; /batch/64/64 is already folded in.
    return jnp.sum(partials)


if __name__ == "__main__":
    key = jax.random.PRNGKey(0)
    k1, k2, k3, k4, k5, k6 = jax.random.split(key, 6)

    # Case 1: small NCHW, single block, no masking.
    shape = (2, 4, 16, 16)
    out1 = jax.random.normal(k1, shape, dtype=jnp.float32)
    tgt1 = jax.random.normal(k2, shape, dtype=jnp.float32)
    loss1 = jax.block_until_ready(l2_loss(out1, tgt1))
    ref1 = jnp.sum((tgt1 - out1) ** 2) / shape[0] / 64.0 / 64.0
    assert jnp.allclose(loss1, ref1, rtol=1e-5, atol=1e-6), (loss1, ref1)

    # Case 2: small row tile forces multi-block grid + partial tail block (and
    # the 2-core split on v7x); exercises the fori_loop + static-tail sub-chunk
    # paths and the tail-block mask.
    shape2 = (5, 5, 64, 64)
    out2 = jax.random.normal(k3, shape2, dtype=jnp.float32)
    tgt2 = jax.random.normal(k4, shape2, dtype=jnp.float32)
    loss2 = jax.block_until_ready(l2_loss(out2, tgt2, _row_tile=576))
    ref2 = jnp.sum((tgt2 - out2) ** 2) / shape2[0] / 64.0 / 64.0
    assert jnp.allclose(loss2, ref2, rtol=1e-4, atol=1e-5), (loss2, ref2)

    # Case 3: ragged numel (zero-pad fallback path).
    shape3 = (3, 3, 10, 10)
    out3 = jax.random.normal(k5, shape3, dtype=jnp.float32)
    tgt3 = jax.random.normal(k6, shape3, dtype=jnp.float32)
    loss3 = jax.block_until_ready(l2_loss(out3, tgt3))
    ref3 = jnp.sum((tgt3 - out3) ** 2) / shape3[0] / 64.0 / 64.0
    assert jnp.allclose(loss3, ref3, rtol=1e-5, atol=1e-6), (loss3, ref3)

    print("KERNEL_OK")
</pallas_src>

<mosaic_0001>
module attributes {stable_mosaic.version = 11 : i64} {
  func.func @sse_kernel(%arg0: i32, %arg1: i32, %arg2: memref<16x128xf32, #tpu.memory_space<vmem>>, %arg3: memref<16x128xf32, #tpu.memory_space<vmem>>, %arg4: memref<8x128xf32, #tpu.memory_space<vmem>>) attributes {dimension_semantics = [#tpu.dimension_semantics<parallel>, #tpu.dimension_semantics<arbitrary>], iteration_bounds = array<i64: 1, 1>, scalar_prefetch = 0 : i64, scratch_operands = 0 : i64, tpu.core_type = #tpu.core_type<tc>, window_params = [{transform_indices = @transform_0, window_bounds = array<i64: 16, 128>}, {transform_indices = @transform_1, window_bounds = array<i64: 16, 128>}, {transform_indices = @transform_2, window_bounds = array<i64: 8, 128>}]} {
    %c0_i32 = arith.constant 0 : i32
    %0 = arith.cmpi eq, %arg1, %c0_i32 : i32
    %1 = arith.extui %0 : i1 to i32
    %c0_i32_0 = arith.constant 0 : i32
    %2 = arith.cmpi ne, %1, %c0_i32_0 : i32
    scf.if %2 {
      %cst_10 = arith.constant 0.000000e+00 : f32
      %15 = vector.broadcast %cst_10 : f32 to vector<8x128xf32>
      %c0_11 = arith.constant 0 : index
      %c0_12 = arith.constant 0 : index
      %16 = vector.load %arg4[%c0_11, %c0_12] : memref<8x128xf32, #tpu.memory_space<vmem>>, vector<8x128xf32>
      tpu.vector_store %arg4[%c0_11, %c0_12], %15 {strides = array<i32>} : memref<8x128xf32, #tpu.memory_space<vmem>>, vector<8x128xf32>,
    } else {
    }
    %c0 = arith.constant 0 : index
    %c0_1 = arith.constant 0 : index
    %3 = vector.load %arg3[%c0, %c0_1] : memref<16x128xf32, #tpu.memory_space<vmem>>, vector<16x128xf32>
    %c0_2 = arith.constant 0 : index
    %c0_3 = arith.constant 0 : index
    %4 = vector.load %arg2[%c0_2, %c0_3] : memref<16x128xf32, #tpu.memory_space<vmem>>, vector<16x128xf32>
    %5 = arith.subf %3, %4 : vector<16x128xf32>
    %c0_4 = arith.constant 0 : index
    %c0_5 = arith.constant 0 : index
    %6 = vector.load %arg4[%c0_4, %c0_5] : memref<8x128xf32, #tpu.memory_space<vmem>>, vector<8x128xf32>
    %7 = arith.mulf %5, %5 : vector<16x128xf32>
    %8 = vector.shape_cast %7 : vector<16x128xf32> to vector<2x8x128xf32>
    %cst = arith.constant dense<0.000000e+00> : vector<8x128xf32>
    %9 = vector.multi_reduction <add>, %8, %cst [0] : vector<2x8x128xf32> to vector<8x128xf32>
    %10 = arith.addf %6, %9 : vector<8x128xf32>
    %c0_6 = arith.constant 0 : index
    %c0_7 = arith.constant 0 : index
    %11 = vector.load %arg4[%c0_6, %c0_7] : memref<8x128xf32, #tpu.memory_space<vmem>>, vector<8x128xf32>
    tpu.vector_store %arg4[%c0_6, %c0_7], %10 {strides = array<i32>} : memref<8x128xf32, #tpu.memory_space<vmem>>, vector<8x128xf32>,
    %c0_i32_8 = arith.constant 0 : i32
    %12 = arith.cmpi eq, %arg1, %c0_i32_8 : i32
    %13 = arith.extui %12 : i1 to i32
    %c0_i32_9 = arith.constant 0 : i32
    %14 = arith.cmpi ne, %13, %c0_i32_9 : i32
    scf.if %14 {
      %c0_10 = arith.constant 0 : index
      %c0_11 = arith.constant 0 : index
      %15 = vector.load %arg4[%c0_10, %c0_11] : memref<8x128xf32, #tpu.memory_space<vmem>>, vector<8x128xf32>
      %cst_12 = arith.constant 1.22070313E-4 : f32
      %16 = vector.broadcast %cst_12 : f32 to vector<8x128xf32>
      %17 = arith.mulf %15, %16 : vector<8x128xf32>
      %c0_13 = arith.constant 0 : index
      %c0_14 = arith.constant 0 : index
      %18 = vector.load %arg4[%c0_13, %c0_14] : memref<8x128xf32, #tpu.memory_space<vmem>>, vector<8x128xf32>
      tpu.vector_store %arg4[%c0_13, %c0_14], %17 {strides = array<i32>} : memref<8x128xf32, #tpu.memory_space<vmem>>, vector<8x128xf32>,
    } else {
    }
    return
  }
  func.func @transform_0(%arg0: i32, %arg1: i32) -> (i32, i32) {
    %c1_i32 = arith.constant 1 : i32
    %0 = arith.muli %arg0, %c1_i32 : i32
    %1 = arith.addi %0, %arg1 : i32
    %c0_i32 = arith.constant 0 : i32
    %2 = arith.minsi %1, %c0_i32 : i32
    %c0_i32_0 = arith.constant 0 : i32
    %c0_i32_1 = arith.constant 0 : i32
    return %2, %c0_i32_0 : i32, i32
  }
  func.func @transform_1(%arg0: i32, %arg1: i32) -> (i32, i32) {
    %c1_i32 = arith.constant 1 : i32
    %0 = arith.muli %arg0, %c1_i32 : i32
    %1 = arith.addi %0, %arg1 : i32
    %c0_i32 = arith.constant 0 : i32
    %2 = arith.minsi %1, %c0_i32 : i32
    %c0_i32_0 = arith.constant 0 : i32
    %c0_i32_1 = arith.constant 0 : i32
    return %2, %c0_i32_0 : i32, i32
  }
  func.func @transform_2(%arg0: i32, %arg1: i32) -> (i32, i32) {
    %c0_i32 = arith.constant 0 : i32
    %c0_i32_0 = arith.constant 0 : i32
    return %arg0, %c0_i32 : i32, i32
  }
}

</mosaic_0001>

<llo_original>
// kernel: tpu_custom_call.1
$region0: #{tpu_custom_call.1}
  #allocation0 [shape = 'u32[]', space=smem, size = 0x4, offset = 0x4, fixed_abs, tag = 'smem constant byte address 0x4 - core index']
  #allocation1 [shape = 'u32[144,128]{1,0:T(1,128)}', space=vmem, size = 0x12000, scoped, tag = 'internal scratch']
  %s0 = inlined_call_operand.hbm [shape: f32[16,128], index: 0, kind: input, shape index: {}]
  %s1 = inlined_call_operand.hbm [shape: f32[16,128], index: 1, kind: input, shape index: {}]
  %s2 = inlined_call_operand.hbm [shape: f32[8,128], index: 2, kind: output, shape index: {}]
  %s3 = sld [smem:[#allocation0]]
  $region34: #{tpu_custom_call.1} parent=0
    _
  %s5 = ssub.s32 1, %s3
  %s6 = scalar_select 0, %s5, %s3
  $region1: #{tpu_custom_call.1} parent=0
    #allocation2 [shape = 'u8[8192]{0}', space=vmem, size = 0x2000, scoped, tag = 'input window, operand 0, single buffered']
    #allocation3 [shape = 's32[1]{0}', space=sflag, size = 0x4, scoped, tag = 'scoped memory for tpu_custom_call.1']
    #allocation4 [shape = 's32[1]{0}', space=sflag, size = 0x4, scoped, tag = 'scoped memory for tpu_custom_call.1']
    #allocation5 [shape = 'u8[8192]{0}', space=vmem, size = 0x2000, scoped, tag = 'input window, operand 1, single buffered']
    #allocation6 [shape = 's32[1]{0}', space=sflag, size = 0x4, scoped, tag = 'scoped memory for tpu_custom_call.1']
    #allocation7 [shape = 'u8[4096]{0}', space=vmem, size = 0x1000, scoped, tag = 'output window, operand 0, single buffered']
    %7 = vsyncpa [#allocation3], 0
    %8 = vsyncpa [#allocation6], 0
    %9 = vsyncpa [#allocation4], 0
    // Predicated region
    $region2: #{tpu_custom_call.1} parent=1 // pred_check
      _
    $region3: #{tpu_custom_call.1} parent=1 // pred_check_branch
      %11 = sbr.rel (0) target = $region5
    $region4: #{tpu_custom_call.1} parent=1 // pred_region
      %s12 = sadd.s32 0, 0
      %p13 = scmp.lt.s32.totalorder %s12, 0
      %s14 = scalar_select %p13, %s12, 0
      %s15 = smul.u32 2, %s14
      %s17 = ssub.s32 256, 256
      %18 = vsyncadd [#allocation3], %s17
      %s19 = smul.addr %s15, 128
      %s20 = scalar_lea.hbm %s0, %s19
      %s21 = sshll.u32 [#allocation2], 4
      %s22 = int_to_ptr.vmem [resolvable:$true] %s21
      %27 = dma.hbm_to_vmem [thread:$0]  %s20, 256, %s22, [#allocation3], 128, 128, 8
    $region5: #{tpu_custom_call.1} parent=1 // pred_fallthru
      _
    // Predicated region
    $region6: #{tpu_custom_call.1} parent=1 // pred_check
      _
    $region7: #{tpu_custom_call.1} parent=1 // pred_check_branch
      %29 = sbr.rel (0) target = $region9
    $region8: #{tpu_custom_call.1} parent=1 // pred_region
      %s30 = sadd.s32 0, 0
      %p31 = scmp.lt.s32.totalorder %s30, 0
      %s32 = scalar_select %p31, %s30, 0
      %s33 = smul.u32 2, %s32
      %s35 = ssub.s32 256, 256
      %36 = vsyncadd [#allocation6], %s35
      %s37 = smul.addr %s33, 128
      %s38 = scalar_lea.hbm %s1, %s37
      %s39 = sshll.u32 [#allocation5], 4
      %s40 = int_to_ptr.vmem [resolvable:$true] %s39
      %45 = dma.hbm_to_vmem [thread:$0]  %s38, 256, %s40, [#allocation6], 128, 128, 8
    $region9: #{tpu_custom_call.1} parent=1 // pred_fallthru
      _
    // Predicated region
    $region10: #{tpu_custom_call.1} parent=1 // pred_check
      _
    $region11: #{tpu_custom_call.1} parent=1 // pred_check_branch
      %47 = sbr.rel (0) target = $region13
    $region12: #{tpu_custom_call.1} parent=1 // pred_region
      %48 = dma.done [#allocation3], 256
    $region13: #{tpu_custom_call.1} parent=1 // pred_fallthru
      _
    // Predicated region
    $region14: #{tpu_custom_call.1} parent=1 // pred_check
      _
    $region15: #{tpu_custom_call.1} parent=1 // pred_check_branch
      %50 = sbr.rel (0) target = $region17
    $region16: #{tpu_custom_call.1} parent=1 // pred_region
      %51 = dma.done [#allocation6], 256
    $region17: #{tpu_custom_call.1} parent=1 // pred_fallthru
      _
    %s52 = sadd.s32 0, 0
    %p53 = scmp.lt.s32.totalorder %s52, 0
    %s54 = scalar_select %p53, %s52, 0
    %s55 = smul.u32 2, %s54
    %s56 = sadd.s32 0, 0
    %p57 = scmp.lt.s32.totalorder %s56, 0
    %s58 = scalar_select %p57, %s56, 0
    %s59 = smul.u32 2, %s58
    %p60 = scmp.eq.s32.totalorder 0, 0
    // Predicated region
    $region18: #{tpu_custom_call.1} parent=1 // pred_check
      %p61 = pneg %p60
    $region19: #{tpu_custom_call.1} parent=1 // pred_check_branch
      %63 = sbr.rel (%p61) target = $region21
    $region20: #{tpu_custom_call.1} parent=1 // pred_region
      %64 = vst [vmem:[#allocation7] sm:$0xff] 0.0
    $region21: #{tpu_custom_call.1} parent=1 // pred_fallthru
      _
    %v65 = vld [vmem:[#allocation5] sm:$0xff]
    %v66 = vld [vmem:[#allocation5 + $0x8] sm:$0xff]
    %v67 = vld [vmem:[#allocation2] sm:$0xff]
    %v68 = vld [vmem:[#allocation2 + $0x8] sm:$0xff]
    %v69 = vsub.f32 %v65, %v67
    %v70 = vsub.f32 %v66, %v68
    %v71 = vld [vmem:[#allocation7] sm:$0xff]
    %v72 = vmul.f32 %v69, %v69
    %v73 = vmul.f32 %v70, %v70
    %v74 = vadd.f32 %v72, %v73
    %v75 = vadd.f32 %v71, %v74
    %76 = vst [vmem:[#allocation7] sm:$0xff] %v75
    // Predicated region
    $region22: #{tpu_custom_call.1} parent=1 // pred_check
      %p77 = pneg %p60
    $region23: #{tpu_custom_call.1} parent=1 // pred_check_branch
      %79 = sbr.rel (%p77) target = $region25
    $region24: #{tpu_custom_call.1} parent=1 // pred_region
      %v80 = vld [vmem:[#allocation7] sm:$0xff]
      %v81 = vmul.f32 %v80, 0.00012207031
      %82 = vst [vmem:[#allocation7] sm:$0xff] %v81
    $region25: #{tpu_custom_call.1} parent=1 // pred_fallthru
      _
    // Predicated region
    $region26: #{tpu_custom_call.1} parent=1 // pred_check
      _
    $region27: #{tpu_custom_call.1} parent=1 // pred_check_branch
      %84 = sbr.rel (0) target = $region29
    $region28: #{tpu_custom_call.1} parent=1 // pred_region
      %s86 = ssub.s32 128, 128
      %87 = vsyncadd [#allocation4], %s86
      %s89 = sshll.u32 [#allocation7], 4
      %s90 = int_to_ptr.vmem [resolvable:$true] %s89
      %92 = dma.vmem_to_hbm [thread:$0]  %s90, 128, %s2, [#allocation4]
    $region29: #{tpu_custom_call.1} parent=1 // pred_fallthru
      _
    // Predicated region
    $region30: #{tpu_custom_call.1} parent=1 // pred_check
      _
    $region31: #{tpu_custom_call.1} parent=1 // pred_check_branch
      %94 = sbr.rel (0) target = $region33
    $region32: #{tpu_custom_call.1} parent=1 // pred_region
      %95 = dma.done [#allocation4], 128
    $region33: #{tpu_custom_call.1} parent=1 // pred_fallthru
      _
    %96 = vsyncpa [#allocation3], 1
    %97 = vsyncpa [#allocation6], 1
    %98 = vsyncpa [#allocation4], 1

</llo_original>
